<compile_context>
chip_gen: v5e
topology: v5e:2x2
jax: 0.10.0
libtpu: 0.0.40
codegen_flags: <defaults>
</compile_context>

<pallas_src>
import jax
import jax.numpy as jnp
from jax import lax
from jax.experimental import pallas as pl
from jax.experimental.pallas import tpu as pltpu


def cnn_kernel(x_ref, vt0_ref, vt1_ref, ut_ref, b_ref, o_ref):
    # x_ref   : VMEM (B, 3) int32  -- [tok0_id, tok1_id, user_id] per row
    # vt0_ref : VMEM (V, 2) f32    -- vocab_mean[v] * W_fused[0, :]
    # vt1_ref : VMEM (V, 2) f32    -- vocab_mean[v] * W_fused[1, :]
    # ut_ref  : VMEM (U, 2) f32    -- user_mean[u]  * W_fused[2, :]
    # b_ref   : VMEM (1, 2) f32    -- Linear bias
    # o_ref   : VMEM (B, 2) f32
    B = o_ref.shape[0]
    V = vt0_ref.shape[0]
    U = ut_ref.shape[0]

    ids = x_ref[...]                                            # (B, 3) int32

    # Fully static one-hot "gather": no DMAs, no dynamic addressing.
    iota_v = lax.broadcasted_iota(jnp.int32, (B, V), 1)
    iota_u = lax.broadcasted_iota(jnp.int32, (B, U), 1)
    oh0 = (iota_v == ids[:, 0:1]).astype(jnp.float32)           # (B, V)
    oh1 = (iota_v == ids[:, 1:2]).astype(jnp.float32)           # (B, V)
    oh2 = (iota_u == ids[:, 2:3]).astype(jnp.float32)           # (B, U)

    out = (jnp.dot(oh0, vt0_ref[...], preferred_element_type=jnp.float32)
           + jnp.dot(oh1, vt1_ref[...], preferred_element_type=jnp.float32)
           + jnp.dot(oh2, ut_ref[...], preferred_element_type=jnp.float32)
           + b_ref[...])
    o_ref[...] = out                                            # single full-tile store


def fuse_cnn_params(params):
    """One-time parameter preprocessing (hoisted out of the per-call path)."""
    conv_w = params["conv_w"].astype(jnp.float32)   # (H, 3)  Conv1d(3, H, 1, bias=False)
    out_w = params["out_w"].astype(jnp.float32)     # (2, H)  Linear(H, 2)
    out_b = params["out_b"].astype(jnp.float32)     # (2,)
    # conv1x1 -> (identity dropout) -> avg_pool1d -> Linear is one linear map:
    #   out[b, j] = sum_c W_fused[c, j] * mean_E(feats[b, c, :]) + out_b[j]
    w_fused = conv_w.T @ out_w.T                    # (3, 2)
    vocab_mean = params["vocab_embedding"].astype(jnp.float32).mean(axis=1)  # (V,)
    user_mean = params["user_embedding"].astype(jnp.float32).mean(axis=1)    # (U,)
    return {
        "vt0": vocab_mean[:, None] * w_fused[0, :],   # (V, 2)
        "vt1": vocab_mean[:, None] * w_fused[1, :],   # (V, 2)
        "ut": user_mean[:, None] * w_fused[2, :],     # (U, 2)
        "bias": out_b.reshape(1, 2),                  # (1, 2)
    }


@jax.jit
def cnn_forward(x, fused):
    B = x.shape[0]
    vmem = pl.BlockSpec(memory_space=pltpu.MemorySpace.VMEM)
    return pl.pallas_call(
        cnn_kernel,
        out_shape=jax.ShapeDtypeStruct((B, 2), jnp.float32),
        in_specs=[vmem, vmem, vmem, vmem, vmem],
        out_specs=vmem,
    )(x.astype(jnp.int32), fused["vt0"], fused["vt1"], fused["ut"], fused["bias"])


def cnn_reference(x, params):
    tokens = params["vocab_embedding"][x[:, :2]]                  # (B, 2, E)
    users = params["user_embedding"][x[:, 2]][:, None, :]         # (B, 1, E)
    feats = jnp.concatenate([tokens, users], axis=1)              # (B, 3, E)
    y = jnp.einsum("hc,bce->bhe", params["conv_w"], feats)        # conv1 (1x1), (B, H, E)
    pooled = y.mean(axis=2)                                       # avg_pool1d + squeeze
    return pooled @ params["out_w"].T + params["out_b"]           # (B, 2)


if __name__ == "__main__":
    V, U, E, H = 50, 10, 32, 32   # vocab_size, num_users, embed_size, hidden_size
    B = 4

    key = jax.random.PRNGKey(0)
    k1, k2, k3, k4, k5, kx1, kx2 = jax.random.split(key, 7)
    params = {
        "vocab_embedding": jax.random.normal(k1, (V, E), jnp.float32),
        "user_embedding": jax.random.normal(k2, (U, E), jnp.float32),
        "conv_w": 0.1 * jax.random.normal(k3, (H, 3), jnp.float32),
        "out_w": 0.1 * jax.random.normal(k4, (2, H), jnp.float32),
        "out_b": 0.1 * jax.random.normal(k5, (2,), jnp.float32),
    }

    tok_ids = jax.random.randint(kx1, (B, 2), 0, V)
    usr_ids = jax.random.randint(kx2, (B, 1), 0, U)
    x = jnp.concatenate([tok_ids, usr_ids], axis=1).astype(jnp.int32)   # (B, 3)

    fused = fuse_cnn_params(params)              # one-time param prep (hoisted)
    out = jax.block_until_ready(cnn_forward(x, fused))
    ref = cnn_reference(x, params)

    assert out.shape == (B, 2), out.shape
    assert jnp.allclose(out, ref, atol=1e-4, rtol=1e-4), (out, ref)
    print("KERNEL_OK")
</pallas_src>

<mosaic_0001>
module attributes {stable_mosaic.version = 11 : i64} {
  func.func @cnn_kernel(%arg0: memref<4x3xi32, #tpu.memory_space<vmem>>, %arg1: memref<50x2xf32, #tpu.memory_space<vmem>>, %arg2: memref<50x2xf32, #tpu.memory_space<vmem>>, %arg3: memref<10x2xf32, #tpu.memory_space<vmem>>, %arg4: memref<1x2xf32, #tpu.memory_space<vmem>>, %arg5: memref<4x2xf32, #tpu.memory_space<vmem>>) attributes {dimension_semantics = [], scalar_prefetch = 0 : i64, scratch_operands = 0 : i64, tpu.core_type = #tpu.core_type<tc>} {
    %c0 = arith.constant 0 : index
    %c0_0 = arith.constant 0 : index
    %0 = vector.load %arg0[%c0, %c0_0] : memref<4x3xi32, #tpu.memory_space<vmem>>, vector<4x3xi32>
    %1 = tpu.iota {dimensions = array<i32: 1>} : vector<4x50xi32>
    %2 = tpu.iota {dimensions = array<i32: 1>} : vector<4x10xi32>
    %3 = vector.extract_strided_slice %0 {offsets = [0, 0], sizes = [4, 1], strides = [1, 1]} : vector<4x3xi32> to vector<4x1xi32>
    %4 = vector.broadcast %3 : vector<4x1xi32> to vector<4x50xi32>
    %5 = arith.cmpi eq, %1, %4 : vector<4x50xi32>
    %6 = arith.extui %5 : vector<4x50xi1> to vector<4x50xi32>
    %7 = arith.sitofp %6 : vector<4x50xi32> to vector<4x50xf32>
    %8 = vector.extract_strided_slice %0 {offsets = [0, 1], sizes = [4, 1], strides = [1, 1]} : vector<4x3xi32> to vector<4x1xi32>
    %9 = vector.broadcast %8 : vector<4x1xi32> to vector<4x50xi32>
    %10 = arith.cmpi eq, %1, %9 : vector<4x50xi32>
    %11 = arith.extui %10 : vector<4x50xi1> to vector<4x50xi32>
    %12 = arith.sitofp %11 : vector<4x50xi32> to vector<4x50xf32>
    %13 = vector.extract_strided_slice %0 {offsets = [0, 2], sizes = [4, 1], strides = [1, 1]} : vector<4x3xi32> to vector<4x1xi32>
    %14 = vector.broadcast %13 : vector<4x1xi32> to vector<4x10xi32>
    %15 = arith.cmpi eq, %2, %14 : vector<4x10xi32>
    %16 = arith.extui %15 : vector<4x10xi1> to vector<4x10xi32>
    %17 = arith.sitofp %16 : vector<4x10xi32> to vector<4x10xf32>
    %c0_1 = arith.constant 0 : index
    %c0_2 = arith.constant 0 : index
    %18 = vector.load %arg1[%c0_1, %c0_2] : memref<50x2xf32, #tpu.memory_space<vmem>>, vector<50x2xf32>
    %cst = arith.constant dense<0.000000e+00> : vector<4x2xf32>
    %19 = tpu.matmul %7, %18, %cst {dimension_numbers = #tpu.dot_dimension_numbers<[1], [0], [0], [1], [0, 0, 1, 1], [], []>} : vector<4x50xf32>, vector<50x2xf32>, vector<4x2xf32> -> vector<4x2xf32>
    %c0_3 = arith.constant 0 : index
    %c0_4 = arith.constant 0 : index
    %20 = vector.load %arg2[%c0_3, %c0_4] : memref<50x2xf32, #tpu.memory_space<vmem>>, vector<50x2xf32>
    %cst_5 = arith.constant dense<0.000000e+00> : vector<4x2xf32>
    %21 = tpu.matmul %12, %20, %cst_5 {dimension_numbers = #tpu.dot_dimension_numbers<[1], [0], [0], [1], [0, 0, 1, 1], [], []>} : vector<4x50xf32>, vector<50x2xf32>, vector<4x2xf32> -> vector<4x2xf32>
    %22 = arith.addf %19, %21 : vector<4x2xf32>
    %c0_6 = arith.constant 0 : index
    %c0_7 = arith.constant 0 : index
    %23 = vector.load %arg3[%c0_6, %c0_7] : memref<10x2xf32, #tpu.memory_space<vmem>>, vector<10x2xf32>
    %cst_8 = arith.constant dense<0.000000e+00> : vector<4x2xf32>
    %24 = tpu.matmul %17, %23, %cst_8 {dimension_numbers = #tpu.dot_dimension_numbers<[1], [0], [0], [1], [0, 0, 1, 1], [], []>} : vector<4x10xf32>, vector<10x2xf32>, vector<4x2xf32> -> vector<4x2xf32>
    %25 = arith.addf %22, %24 : vector<4x2xf32>
    %c0_9 = arith.constant 0 : index
    %c0_10 = arith.constant 0 : index
    %26 = vector.load %arg4[%c0_9, %c0_10] : memref<1x2xf32, #tpu.memory_space<vmem>>, vector<1x2xf32>
    %27 = vector.broadcast %26 : vector<1x2xf32> to vector<4x2xf32>
    %28 = arith.addf %25, %27 : vector<4x2xf32>
    %c0_11 = arith.constant 0 : index
    %c0_12 = arith.constant 0 : index
    %29 = vector.load %arg5[%c0_11, %c0_12] : memref<4x2xf32, #tpu.memory_space<vmem>>, vector<4x2xf32>
    tpu.vector_store %arg5[%c0_11, %c0_12], %28 {strides = array<i32>} : memref<4x2xf32, #tpu.memory_space<vmem>>, vector<4x2xf32>,
    return
  }
}

</mosaic_0001>

<llo_original>
// kernel: cnn_forward.1
$region0: #{cnn_forward.1}
  #allocation0 [shape = 'u32[]', space=smem, size = 0x4, offset = 0x4, fixed_abs, tag = 'smem constant byte address 0x4 - core index']
  #allocation1 [shape = 'u32[72,128]{1,0:T(1,128)}', space=vmem, size = 0x9000, scoped, tag = 'internal scratch']
  %s0 = inlined_call_operand.vmem [shape: s32[4,3], index: 0, kind: input, shape index: {}]
  %s1 = inlined_call_operand.vmem [shape: f32[50,2], index: 1, kind: input, shape index: {}]
  %s2 = inlined_call_operand.vmem [shape: f32[50,2], index: 2, kind: input, shape index: {}]
  %s3 = inlined_call_operand.vmem [shape: f32[10,2], index: 3, kind: input, shape index: {}]
  %s4 = inlined_call_operand.vmem [shape: f32[1,2], index: 4, kind: input, shape index: {}]
  %s5 = inlined_call_operand.vmem [shape: f32[4,2], index: 5, kind: output, shape index: {}]
  %s6 = sld [smem:[#allocation0]]
  $region30: #{cnn_forward.1} parent=0
    _
  %s8 = ssub.s32 1, %s6
  %s9 = scalar_select 0, %s8, %s6
  // Predicated region
  $region2: #{cnn_forward.1} parent=0 // pred_check
    _
  $region3: #{cnn_forward.1} parent=0 // pred_check_branch
    %11 = sbr.rel (0) target = $region5
  $region4: #{cnn_forward.1} parent=0 // pred_region
    _
  $region5: #{cnn_forward.1} parent=0 // pred_fallthru
    _
  // Predicated region
  $region6: #{cnn_forward.1} parent=0 // pred_check
    _
  $region7: #{cnn_forward.1} parent=0 // pred_check_branch
    %13 = sbr.rel (0) target = $region9
  $region8: #{cnn_forward.1} parent=0 // pred_region
    _
  $region9: #{cnn_forward.1} parent=0 // pred_fallthru
    _
  // Predicated region
  $region10: #{cnn_forward.1} parent=0 // pred_check
    _
  $region11: #{cnn_forward.1} parent=0 // pred_check_branch
    %15 = sbr.rel (0) target = $region13
  $region12: #{cnn_forward.1} parent=0 // pred_region
    _
  $region13: #{cnn_forward.1} parent=0 // pred_fallthru
    _
  // Predicated region
  $region14: #{cnn_forward.1} parent=0 // pred_check
    _
  $region15: #{cnn_forward.1} parent=0 // pred_check_branch
    %17 = sbr.rel (0) target = $region17
  $region16: #{cnn_forward.1} parent=0 // pred_region
    _
  $region17: #{cnn_forward.1} parent=0 // pred_fallthru
    _
  // Predicated region
  $region18: #{cnn_forward.1} parent=0 // pred_check
    _
  $region19: #{cnn_forward.1} parent=0 // pred_check_branch
    %19 = sbr.rel (0) target = $region21
  $region20: #{cnn_forward.1} parent=0 // pred_region
    _
  $region21: #{cnn_forward.1} parent=0 // pred_fallthru
    _
  %v20 = vld [vmem:[%s0] sm:$0xf]
  %v21 = vlaneseq
  %v22 = vand.u32 %v21, 127
  %23 = vset.pattern.permute.xlu0 0
  %24 = vperm.xlu0 %23, %v20
  %v25 = vpop.permute.xlu0 %24
  %vm26 = vcmp.eq.s32.totalorder %v22, %v25
  %v27 = vsel %vm26, 1, 0
  %v28 = vcvt.s32.f32 %v27
  %29 = vset.pattern.permute.xlu0 1
  %30 = vperm.xlu0 %29, %v20
  %v31 = vpop.permute.xlu0 %30
  %vm32 = vcmp.eq.s32.totalorder %v22, %v31
  %v33 = vsel %vm32, 1, 0
  %v34 = vcvt.s32.f32 %v33
  %35 = vset.pattern.permute.xlu0 2
  %36 = vperm.xlu0 %35, %v20
  %v37 = vpop.permute.xlu0 %36
  %vm38 = vcmp.eq.s32.totalorder %v22, %v37
  %v39 = vsel %vm38, 1, 0
  %v40 = vcvt.s32.f32 %v39
  %v41 = vld [vmem:[%s1] sm:$0xff]
  %v42 = vld [vmem:[%s1 + $0x8] sm:$0xff]
  %v43 = vld [vmem:[%s1 + $0x10] sm:$0xff]
  %v44 = vld [vmem:[%s1 + $0x18] sm:$0xff]
  %v45 = vld [vmem:[%s1 + $0x20] sm:$0xff]
  %v46 = vld [vmem:[%s1 + $0x28] sm:$0xff]
  %v47 = vld [vmem:[%s1 + $0x30] sm:$0x3]
  %v48 = vld [vmem:[%s2] sm:$0xff]
  %v49 = vld [vmem:[%s2 + $0x8] sm:$0xff]
  %v50 = vld [vmem:[%s2 + $0x10] sm:$0xff]
  %v51 = vld [vmem:[%s2 + $0x18] sm:$0xff]
  %v52 = vld [vmem:[%s2 + $0x20] sm:$0xff]
  %v53 = vld [vmem:[%s2 + $0x28] sm:$0xff]
  %v54 = vld [vmem:[%s2 + $0x30] sm:$0x3]
  %vm55 = vcmask 408576
  %v57 = vsel %vm55, %v34, 0
  %vm59 = vcmask 1041408
  %v61 = vsel %vm59, %v54, 0
  %63 = vmatpush.msra.mxu0 0.0
  %64 = vmatpush.msra.mxu0 0.0
  %65 = vmatpush.msra.mxu0 0.0
  %66 = vmatpush.msra.mxu0 0.0
  %67 = vmatpush.msra.mxu0 0.0
  %68 = vmatpush.msra.mxu0 0.0
  %69 = vmatpush.msra.mxu0 0.0
  %70 = vmatpush.msra.mxu0 0.0
  %71 = vmatpush.msra.mxu0 0.0
  %72 = vmatpush.msra.mxu0 %v61
  %73 = vmatpush.msra.mxu0 %v53
  %74 = vmatpush.msra.mxu0 %v52
  %75 = vmatpush.msra.mxu0 %v51
  %76 = vmatpush.msra.mxu0 %v50
  %77 = vmatpush.msra.mxu0 %v49
  %78 = vmatpush.msra.mxu0 %v48
  %79 = vmatmul.f32.gmra.mxu0 %v57
  %v80 = vpop.f32.mrf.mxu0
  %v81 = vadd.f32 0.0, %v80
  %82 = vdwg.mxu0
  %v84 = vsel %vm55, %v28, 0
  %v87 = vsel %vm59, %v47, 0
  %89 = vmatpush.msra.mxu0 0.0
  %90 = vmatpush.msra.mxu0 0.0
  %91 = vmatpush.msra.mxu0 0.0
  %92 = vmatpush.msra.mxu0 0.0
  %93 = vmatpush.msra.mxu0 0.0
  %94 = vmatpush.msra.mxu0 0.0
  %95 = vmatpush.msra.mxu0 0.0
  %96 = vmatpush.msra.mxu0 0.0
  %97 = vmatpush.msra.mxu0 0.0
  %98 = vmatpush.msra.mxu0 %v87
  %99 = vmatpush.msra.mxu0 %v46
  %100 = vmatpush.msra.mxu0 %v45
  %101 = vmatpush.msra.mxu0 %v44
  %102 = vmatpush.msra.mxu0 %v43
  %103 = vmatpush.msra.mxu0 %v42
  %104 = vmatpush.msra.mxu0 %v41
  %105 = vmatmul.f32.gmra.mxu0 %v84
  %v106 = vpop.f32.mrf.mxu0
  %v107 = vadd.f32 %v81, %v106
  %108 = vdwg.mxu0
  %v109 = vld [vmem:[%s3] sm:$0xff]
  %v110 = vld [vmem:[%s3 + $0x8] sm:$0x3]
  %vm111 = vcmask 80896
  %v113 = vsel %vm111, %v40, 0
  %v116 = vsel %vm59, %v110, 0
  %118 = vmatpush.msra.mxu0 0.0
  %119 = vmatpush.msra.mxu0 0.0
  %120 = vmatpush.msra.mxu0 0.0
  %121 = vmatpush.msra.mxu0 0.0
  %122 = vmatpush.msra.mxu0 0.0
  %123 = vmatpush.msra.mxu0 0.0
  %124 = vmatpush.msra.mxu0 0.0
  %125 = vmatpush.msra.mxu0 0.0
  %126 = vmatpush.msra.mxu0 0.0
  %127 = vmatpush.msra.mxu0 0.0
  %128 = vmatpush.msra.mxu0 0.0
  %129 = vmatpush.msra.mxu0 0.0
  %130 = vmatpush.msra.mxu0 0.0
  %131 = vmatpush.msra.mxu0 0.0
  %132 = vmatpush.msra.mxu0 %v116
  %133 = vmatpush.msra.mxu0 %v109
  %134 = vmatmul.f32.gmra.mxu0 %v113
  %v135 = vpop.f32.mrf.mxu0
  %v136 = vadd.f32 0.0, %v135
  %137 = vdwg.mxu0
  %v138 = vadd.f32 %v107, %v136
  %v139 = vld [vmem:[%s4] sm:$0x1]
  %v141 = vperm.slane %v139, 0
  %v143 = vadd.f32 %v138, %v141
  %vm144 = vcmask 11264
  %145 = vst.msk [vmem:[%s5] sm:$0xf] %vm144, %v143
  // Predicated region
  $region22: #{cnn_forward.1} parent=0 // pred_check
    _
  $region23: #{cnn_forward.1} parent=0 // pred_check_branch
    %147 = sbr.rel (0) target = $region25
  $region24: #{cnn_forward.1} parent=0 // pred_region
    _
  $region25: #{cnn_forward.1} parent=0 // pred_fallthru
    _
  // Predicated region
  $region26: #{cnn_forward.1} parent=0 // pred_check
    _
  $region27: #{cnn_forward.1} parent=0 // pred_check_branch
    %149 = sbr.rel (0) target = $region29
  $region28: #{cnn_forward.1} parent=0 // pred_region
    _
  $region29: #{cnn_forward.1} parent=0 // pred_fallthru
    _

</llo_original>
